<compile_context>
chip_gen: v5e
topology: v5e:2x2
jax: 0.10.0
libtpu: 0.0.40
codegen_flags: <defaults>
</compile_context>

<pallas_src>
import functools

import jax
import jax.numpy as jnp
import numpy as np
from jax.experimental import pallas as pl
from jax.experimental.pallas import tpu as pltpu


def _round_up(x, m):
    return (x + m - 1) // m * m


def _decoder_kernel(z_ref, w_ref, b_ref, out_ref, *, layer_specs):
    """Fused decoder forward on one batch tile.

    layer_specs: tuple of (row_offset, din, dout) per layer; the last layer's
    dout is already padded to a multiple of 128 (zero weights/bias in the pad),
    so the final store is lane-dense.
    """
    h = z_ref[...]
    n_layers = len(layer_specs)
    for li, (row_off, din, dout) in enumerate(layer_specs):
        w = w_ref[pl.ds(row_off, din), pl.ds(0, dout)]
        b = b_ref[pl.ds(li, 1), pl.ds(0, dout)]
        y = jnp.dot(h, w, preferred_element_type=jnp.float32) + b
        if li < n_layers - 1:
            h = jnp.maximum(y, 0.0)          # hidden layers: Linear + ReLU
        else:
            h = jnp.tanh(y)                  # output layer: Linear + Tanh
    out_ref[...] = h.astype(out_ref.dtype)


def pack_decoder_params(weights, biases):
    """Pack per-layer (din, dout) weights and (dout,) biases into two buffers.

    Weights are stacked along the sublane (row) axis at 8-aligned offsets;
    the lane width is the max layer width rounded up to 128.  The final layer
    is zero-padded on the lane axis to a multiple of 128 so the kernel output
    is lane-dense (tanh(0) = 0 in the padded lanes, sliced off in the wrapper).
    """
    n_layers = len(weights)
    dins = [int(w.shape[0]) for w in weights]
    douts = [int(w.shape[1]) for w in weights]
    output_dim = douts[-1]
    out_pad = _round_up(output_dim, 128)
    lane = _round_up(max(max(douts), out_pad), 128)

    row_offs, off = [], 0
    for din in dins:
        row_offs.append(off)
        off += _round_up(din, 8)
    total_rows = _round_up(off, 8)

    w_buf = np.zeros((total_rows, lane), np.float32)
    b_buf = np.zeros((_round_up(n_layers, 8), lane), np.float32)
    layer_specs = []
    for i, (w, b) in enumerate(zip(weights, biases)):
        din, dout = int(w.shape[0]), int(w.shape[1])
        w_buf[row_offs[i]:row_offs[i] + din, :dout] = np.asarray(w)
        b_buf[i, :dout] = np.asarray(b)
        use_dout = out_pad if i == n_layers - 1 else dout
        layer_specs.append((row_offs[i], din, use_dout))

    return jnp.asarray(w_buf), jnp.asarray(b_buf), tuple(layer_specs), out_pad, output_dim


def vae_decoder_forward(z, w_buf, b_buf, layer_specs, out_pad, output_dim):
    batch, latent_dim = z.shape

    # Batch tile: full batch when small, otherwise 128-row MXU-shaped tiles.
    bm = batch if batch <= 128 else 128
    batch_p = _round_up(batch, bm)
    if batch_p != batch:
        z = jnp.pad(z, ((0, batch_p - batch), (0, 0)))
    grid = (batch_p // bm,)

    kernel = functools.partial(_decoder_kernel, layer_specs=layer_specs)
    out = pl.pallas_call(
        kernel,
        out_shape=jax.ShapeDtypeStruct((batch_p, out_pad), jnp.float32),
        grid=grid,
        in_specs=[
            pl.BlockSpec((bm, latent_dim), lambda i: (i, 0)),      # activations: tiled over batch
            pl.BlockSpec(w_buf.shape, lambda i: (0, 0)),           # packed weights: VMEM-resident
            pl.BlockSpec(b_buf.shape, lambda i: (0, 0)),           # packed biases: VMEM-resident
        ],
        out_specs=pl.BlockSpec((bm, out_pad), lambda i: (i, 0)),   # lane-dense output slab
        compiler_params=pltpu.CompilerParams(
            dimension_semantics=("parallel",),                     # dual-TC sharding on v7x
        ),
    )(z, w_buf, b_buf)
    return out[:batch, :output_dim]


def init_decoder_params(key, latent_dim, hidden_dims, output_dim):
    """nn.Linear-style init. Weights stored as (in, out); biases as (out,)."""
    weights, biases = [], []

    def linear(k, din, dout):
        kw, kb = jax.random.split(k)
        bound = 1.0 / np.sqrt(din)
        w = jax.random.uniform(kw, (din, dout), jnp.float32, -bound, bound)
        b = jax.random.uniform(kb, (dout,), jnp.float32, -bound, bound)
        return w, b

    dims = [latent_dim] + list(hidden_dims) + [output_dim]
    keys = jax.random.split(key, len(dims) - 1)
    for k, din, dout in zip(keys, dims[:-1], dims[1:]):
        w, b = linear(k, din, dout)
        weights.append(w)
        biases.append(b)
    return weights, biases


def decoder_reference(z, weights, biases):
    """Pure-JAX reference mirroring the PyTorch VAE_decoder forward."""
    h = z
    for w, b in zip(weights[:-1], biases[:-1]):
        h = jnp.maximum(h @ w + b, 0.0)
    return jnp.tanh(h @ weights[-1] + biases[-1])


if __name__ == "__main__":
    # Small sizes consistent with an MLP VAE decoder.
    batch = 8
    latent_dim = 16
    hidden_dims = [32, 64]
    output_dim = 256   # lane-dense output width for the demo

    root = jax.random.PRNGKey(0)
    k_z, k_params = jax.random.split(root)

    z = jax.random.normal(k_z, (batch, latent_dim), jnp.float32)
    weights, biases = init_decoder_params(k_params, latent_dim, hidden_dims, output_dim)

    w_buf, b_buf, layer_specs, out_pad, out_dim = pack_decoder_params(weights, biases)

    recon = vae_decoder_forward(z, w_buf, b_buf, layer_specs, out_pad, out_dim)
    jax.block_until_ready(recon)

    # sanity check against pure-JAX reference
    r_ref = decoder_reference(z, weights, biases)
    assert recon.shape == (batch, output_dim)
    assert jnp.allclose(recon, r_ref, atol=1e-4, rtol=1e-4)

    print("KERNEL_OK")
</pallas_src>

<mosaic_0001>
module attributes {stable_mosaic.version = 11 : i64} {
  func.func @_decoder_kernel(%arg0: i32, %arg1: memref<8x16xf32, #tpu.memory_space<vmem>>, %arg2: memref<112x256xf32, #tpu.memory_space<vmem>>, %arg3: memref<8x256xf32, #tpu.memory_space<vmem>>, %arg4: memref<8x256xf32, #tpu.memory_space<vmem>>) attributes {dimension_semantics = [#tpu.dimension_semantics<parallel>], iteration_bounds = array<i64: 1>, scalar_prefetch = 0 : i64, scratch_operands = 0 : i64, tpu.core_type = #tpu.core_type<tc>, window_params = [{transform_indices = @transform_0, window_bounds = array<i64: 8, 16>}, {pipeline_mode = #tpu.pipeline_mode<synchronous>, transform_indices = @transform_1, window_bounds = array<i64: 112, 256>}, {pipeline_mode = #tpu.pipeline_mode<synchronous>, transform_indices = @transform_2, window_bounds = array<i64: 8, 256>}, {transform_indices = @transform_3, window_bounds = array<i64: 8, 256>}]} {
    %c0 = arith.constant 0 : index
    %c0_0 = arith.constant 0 : index
    %0 = vector.load %arg1[%c0, %c0_0] : memref<8x16xf32, #tpu.memory_space<vmem>>, vector<8x16xf32>
    %c0_1 = arith.constant 0 : index
    %c0_2 = arith.constant 0 : index
    %1 = vector.load %arg2[%c0_1, %c0_2] : memref<112x256xf32, #tpu.memory_space<vmem>>, vector<16x32xf32>
    %c0_3 = arith.constant 0 : index
    %c0_4 = arith.constant 0 : index
    %2 = vector.load %arg3[%c0_3, %c0_4] : memref<8x256xf32, #tpu.memory_space<vmem>>, vector<1x32xf32>
    %cst = arith.constant dense<0.000000e+00> : vector<8x32xf32>
    %3 = tpu.matmul %0, %1, %cst {dimension_numbers = #tpu.dot_dimension_numbers<[1], [0], [0], [1], [0, 0, 1, 1], [], []>} : vector<8x16xf32>, vector<16x32xf32>, vector<8x32xf32> -> vector<8x32xf32>
    %4 = vector.broadcast %2 : vector<1x32xf32> to vector<8x32xf32>
    %5 = arith.addf %3, %4 : vector<8x32xf32>
    %cst_5 = arith.constant 0.000000e+00 : f32
    %6 = vector.broadcast %cst_5 : f32 to vector<8x32xf32>
    %7 = arith.maximumf %5, %6 : vector<8x32xf32>
    %c16 = arith.constant 16 : index
    %c0_6 = arith.constant 0 : index
    %8 = vector.load %arg2[%c16, %c0_6] : memref<112x256xf32, #tpu.memory_space<vmem>>, vector<32x64xf32>
    %c1 = arith.constant 1 : index
    %c0_7 = arith.constant 0 : index
    %9 = vector.load %arg3[%c1, %c0_7] : memref<8x256xf32, #tpu.memory_space<vmem>>, vector<1x64xf32>
    %cst_8 = arith.constant dense<0.000000e+00> : vector<8x64xf32>
    %10 = tpu.matmul %7, %8, %cst_8 {dimension_numbers = #tpu.dot_dimension_numbers<[1], [0], [0], [1], [0, 0, 1, 1], [], []>} : vector<8x32xf32>, vector<32x64xf32>, vector<8x64xf32> -> vector<8x64xf32>
    %11 = vector.broadcast %9 : vector<1x64xf32> to vector<8x64xf32>
    %12 = arith.addf %10, %11 : vector<8x64xf32>
    %cst_9 = arith.constant 0.000000e+00 : f32
    %13 = vector.broadcast %cst_9 : f32 to vector<8x64xf32>
    %14 = arith.maximumf %12, %13 : vector<8x64xf32>
    %c48 = arith.constant 48 : index
    %c0_10 = arith.constant 0 : index
    %15 = vector.load %arg2[%c48, %c0_10] : memref<112x256xf32, #tpu.memory_space<vmem>>, vector<64x256xf32>
    %c2 = arith.constant 2 : index
    %c0_11 = arith.constant 0 : index
    %16 = vector.load %arg3[%c2, %c0_11] : memref<8x256xf32, #tpu.memory_space<vmem>>, vector<1x256xf32>
    %cst_12 = arith.constant dense<0.000000e+00> : vector<8x256xf32>
    %17 = tpu.matmul %14, %15, %cst_12 {dimension_numbers = #tpu.dot_dimension_numbers<[1], [0], [0], [1], [0, 0, 1, 1], [], []>} : vector<8x64xf32>, vector<64x256xf32>, vector<8x256xf32> -> vector<8x256xf32>
    %18 = vector.broadcast %16 : vector<1x256xf32> to vector<8x256xf32>
    %19 = arith.addf %17, %18 : vector<8x256xf32>
    %20 = math.tanh %19 : vector<8x256xf32>
    %c0_13 = arith.constant 0 : index
    %c0_14 = arith.constant 0 : index
    %21 = vector.load %arg4[%c0_13, %c0_14] : memref<8x256xf32, #tpu.memory_space<vmem>>, vector<8x256xf32>
    tpu.vector_store %arg4[%c0_13, %c0_14], %20 {strides = array<i32>} : memref<8x256xf32, #tpu.memory_space<vmem>>, vector<8x256xf32>,
    return
  }
  func.func @transform_0(%arg0: i32) -> (i32, i32) {
    %c0_i32 = arith.constant 0 : i32
    %c0_i32_0 = arith.constant 0 : i32
    return %arg0, %c0_i32 : i32, i32
  }
  func.func @transform_1(%arg0: i32) -> (i32, i32) {
    %c0_i32 = arith.constant 0 : i32
    %c0_i32_0 = arith.constant 0 : i32
    %c0_i32_1 = arith.constant 0 : i32
    return %c0_i32, %c0_i32_0 : i32, i32
  }
  func.func @transform_2(%arg0: i32) -> (i32, i32) {
    %c0_i32 = arith.constant 0 : i32
    %c0_i32_0 = arith.constant 0 : i32
    %c0_i32_1 = arith.constant 0 : i32
    return %c0_i32, %c0_i32_0 : i32, i32
  }
  func.func @transform_3(%arg0: i32) -> (i32, i32) {
    %c0_i32 = arith.constant 0 : i32
    %c0_i32_0 = arith.constant 0 : i32
    return %arg0, %c0_i32 : i32, i32
  }
}

</mosaic_0001>

<llo_original>
// kernel: tpu_custom_call.1
$region0: #{tpu_custom_call.1}
  #allocation0 [shape = 'u32[]', space=smem, size = 0x4, offset = 0x4, fixed_abs, tag = 'smem constant byte address 0x4 - core index']
  #allocation1 [shape = 'u32[72,128]{1,0:T(1,128)}', space=vmem, size = 0x9000, scoped, tag = 'internal scratch']
  %s0 = inlined_call_operand.hbm [shape: f32[8,16], index: 0, kind: input, shape index: {}]
  %s1 = inlined_call_operand.hbm [shape: f32[112,256], index: 1, kind: input, shape index: {}]
  %s2 = inlined_call_operand.hbm [shape: f32[8,256], index: 2, kind: input, shape index: {}]
  %s3 = inlined_call_operand.hbm [shape: f32[8,256], index: 3, kind: output, shape index: {}]
  %s4 = sld [smem:[#allocation0]]
  $region34: #{tpu_custom_call.1} parent=0
    _
  %s6 = ssub.s32 1, %s4
  %s7 = scalar_select 0, %s6, %s4
  $region1: #{tpu_custom_call.1} parent=0
    #allocation2 [shape = 'u8[4096]{0}', space=vmem, size = 0x1000, scoped, tag = 'input window, operand 0, single buffered']
    #allocation3 [shape = 's32[1]{0}', space=sflag, size = 0x4, scoped, tag = 'scoped memory for tpu_custom_call.1']
    #allocation4 [shape = 's32[1]{0}', space=sflag, size = 0x4, scoped, tag = 'scoped memory for tpu_custom_call.1']
    #allocation5 [shape = 'u8[114688]{0}', space=vmem, size = 0x1c000, scoped, tag = 'input window, operand 1, single buffered']
    #allocation6 [shape = 's32[1]{0}', space=sflag, size = 0x4, scoped, tag = 'scoped memory for tpu_custom_call.1']
    #allocation7 [shape = 'u8[8192]{0}', space=vmem, size = 0x2000, scoped, tag = 'input window, operand 2, single buffered']
    #allocation8 [shape = 'u8[8192]{0}', space=vmem, size = 0x2000, scoped, tag = 'output window, operand 0, single buffered']
    %8 = vsyncpa [#allocation3], 0
    %9 = vsyncpa [#allocation6], 0
    %10 = vsyncpa [#allocation4], 0
    // Predicated region
    $region2: #{tpu_custom_call.1} parent=1 // pred_check
      _
    $region3: #{tpu_custom_call.1} parent=1 // pred_check_branch
      %12 = sbr.rel (0) target = $region5
    $region4: #{tpu_custom_call.1} parent=1 // pred_region
      %14 = vsyncadd [#allocation3], 0
      %s16 = sshll.u32 %s0, 4
      %s17 = int_to_ptr.hbm [resolvable:$true] %s16
      %s18 = sshll.u32 [#allocation2], 4
      %s19 = int_to_ptr.vmem [resolvable:$true] %s18
      %21 = dma.hbm_to_vmem [thread:$0]  %s17, 128, %s19, [#allocation3]
    $region5: #{tpu_custom_call.1} parent=1 // pred_fallthru
      _
    // Predicated region
    $region6: #{tpu_custom_call.1} parent=1 // pred_check
      _
    $region7: #{tpu_custom_call.1} parent=1 // pred_check_branch
      %23 = sbr.rel (0) target = $region9
    $region8: #{tpu_custom_call.1} parent=1 // pred_region
      %25 = vsyncadd [#allocation6], 0
      %s26 = sshll.u32 %s1, 4
      %s27 = int_to_ptr.hbm [resolvable:$true] %s26
      %s28 = sshll.u32 [#allocation5], 4
      %s29 = int_to_ptr.vmem [resolvable:$true] %s28
      %34 = dma.hbm_to_vmem [thread:$0]  %s27, 3584, %s29, [#allocation6], 256, 256, 16
    $region9: #{tpu_custom_call.1} parent=1 // pred_fallthru
      _
    // Predicated region
    $region10: #{tpu_custom_call.1} parent=1 // pred_check
      _
    $region11: #{tpu_custom_call.1} parent=1 // pred_check_branch
      %36 = sbr.rel (0) target = $region13
    $region12: #{tpu_custom_call.1} parent=1 // pred_region
      %38 = vsyncadd [#allocation6], 0
      %s40 = sshll.u32 %s2, 4
      %s41 = int_to_ptr.hbm [resolvable:$true] %s40
      %s42 = sshll.u32 [#allocation7], 4
      %s43 = int_to_ptr.vmem [resolvable:$true] %s42
      %45 = dma.hbm_to_vmem [thread:$0]  %s41, 256, %s43, [#allocation6]
    $region13: #{tpu_custom_call.1} parent=1 // pred_fallthru
      _
    // Predicated region
    $region14: #{tpu_custom_call.1} parent=1 // pred_check
      _
    $region15: #{tpu_custom_call.1} parent=1 // pred_check_branch
      %47 = sbr.rel (0) target = $region17
    $region16: #{tpu_custom_call.1} parent=1 // pred_region
      %49 = dma.done [#allocation3], 128
    $region17: #{tpu_custom_call.1} parent=1 // pred_fallthru
      _
    // Predicated region
    $region18: #{tpu_custom_call.1} parent=1 // pred_check
      _
    $region19: #{tpu_custom_call.1} parent=1 // pred_check_branch
      %51 = sbr.rel (0) target = $region21
    $region20: #{tpu_custom_call.1} parent=1 // pred_region
      %53 = dma.done [#allocation6], 3584
    $region21: #{tpu_custom_call.1} parent=1 // pred_fallthru
      _
    // Predicated region
    $region22: #{tpu_custom_call.1} parent=1 // pred_check
      _
    $region23: #{tpu_custom_call.1} parent=1 // pred_check_branch
      %55 = sbr.rel (0) target = $region25
    $region24: #{tpu_custom_call.1} parent=1 // pred_region
      %57 = dma.done [#allocation6], 256
    $region25: #{tpu_custom_call.1} parent=1 // pred_fallthru
      _
    %v58 = vld [vmem:[#allocation2] sm:$0xff]
    %v59 = vld [vmem:[#allocation5] sm:$0xff]
    %v60 = vld [vmem:[#allocation5 + $0x10] sm:$0xff]
    %v61 = vld [vmem:[#allocation7] ss:$0 sm:$0xff]
    %vm62 = vcmask 130048
    %v64 = vsel %vm62, %v58, 0
    %66 = vmatpush.msra.mxu0 0.0
    %67 = vmatpush.msra.mxu0 0.0
    %68 = vmatpush.msra.mxu0 0.0
    %69 = vmatpush.msra.mxu0 0.0
    %70 = vmatpush.msra.mxu0 0.0
    %71 = vmatpush.msra.mxu0 0.0
    %72 = vmatpush.msra.mxu0 0.0
    %73 = vmatpush.msra.mxu0 0.0
    %74 = vmatpush.msra.mxu0 0.0
    %75 = vmatpush.msra.mxu0 0.0
    %76 = vmatpush.msra.mxu0 0.0
    %77 = vmatpush.msra.mxu0 0.0
    %78 = vmatpush.msra.mxu0 0.0
    %79 = vmatpush.msra.mxu0 0.0
    %80 = vmatpush.msra.mxu0 %v60
    %81 = vmatpush.msra.mxu0 %v59
    %82 = vmatmul.f32.gmra.mxu0 %v64
    %v83 = vpop.f32.mrf.mxu0
    %v84 = vadd.f32 %v61, %v83
    %85 = vdwg.mxu0
    %v86 = vmax.f32 %v84, 0.0
    %v87 = vld [vmem:[#allocation5 + $0x20] sm:$0xff]
    %v88 = vld [vmem:[#allocation5 + $0x30] sm:$0xff]
    %v89 = vld [vmem:[#allocation5 + $0x40] sm:$0xff]
    %v90 = vld [vmem:[#allocation5 + $0x50] sm:$0xff]
    %v91 = vld [vmem:[#allocation7 + $0x1] ss:$0 sm:$0xff]
    %vm92 = vcmask 261120
    %v94 = vsel %vm92, %v86, 0
    %96 = vmatpush.msra.mxu0 0.0
    %97 = vmatpush.msra.mxu0 0.0
    %98 = vmatpush.msra.mxu0 0.0
    %99 = vmatpush.msra.mxu0 0.0
    %100 = vmatpush.msra.mxu0 0.0
    %101 = vmatpush.msra.mxu0 0.0
    %102 = vmatpush.msra.mxu0 0.0
    %103 = vmatpush.msra.mxu0 0.0
    %104 = vmatpush.msra.mxu0 0.0
    %105 = vmatpush.msra.mxu0 0.0
    %106 = vmatpush.msra.mxu0 0.0
    %107 = vmatpush.msra.mxu0 0.0
    %108 = vmatpush.msra.mxu0 %v90
    %109 = vmatpush.msra.mxu0 %v89
    %110 = vmatpush.msra.mxu0 %v88
    %111 = vmatpush.msra.mxu0 %v87
    %112 = vmatmul.f32.gmra.mxu0 %v94
    %v113 = vpop.f32.mrf.mxu0
    %v114 = vadd.f32 %v91, %v113
    %115 = vdwg.mxu0
    %v116 = vmax.f32 %v114, 0.0
    %v117 = vld [vmem:[#allocation5 + $0x60] sm:$0xff]
    %v118 = vld [vmem:[#allocation5 + $0x68] sm:$0xff]
    %v119 = vld [vmem:[#allocation5 + $0x70] sm:$0xff]
    %v120 = vld [vmem:[#allocation5 + $0x78] sm:$0xff]
    %v121 = vld [vmem:[#allocation5 + $0x80] sm:$0xff]
    %v122 = vld [vmem:[#allocation5 + $0x88] sm:$0xff]
    %v123 = vld [vmem:[#allocation5 + $0x90] sm:$0xff]
    %v124 = vld [vmem:[#allocation5 + $0x98] sm:$0xff]
    %v125 = vld [vmem:[#allocation5 + $0xa0] sm:$0xff]
    %v126 = vld [vmem:[#allocation5 + $0xa8] sm:$0xff]
    %v127 = vld [vmem:[#allocation5 + $0xb0] sm:$0xff]
    %v128 = vld [vmem:[#allocation5 + $0xb8] sm:$0xff]
    %v129 = vld [vmem:[#allocation5 + $0xc0] sm:$0xff]
    %v130 = vld [vmem:[#allocation5 + $0xc8] sm:$0xff]
    %v131 = vld [vmem:[#allocation5 + $0xd0] sm:$0xff]
    %v132 = vld [vmem:[#allocation5 + $0xd8] sm:$0xff]
    %s133 = scalar_lea.vmem [#allocation7], 2
    %v134 = vld [vmem:[%s133] ss:$8 sm:$0x3]
    %v136 = vperm.slane %v134, 0
    %v137 = vperm.slane %v134, 1
    %vm140 = vcmask 523264
    %v142 = vsel %vm140, %v116, 0
    %144 = vmatpush.msra.mxu0 0.0
    %145 = vmatpush.msra.mxu0 0.0
    %146 = vmatpush.msra.mxu0 0.0
    %147 = vmatpush.msra.mxu0 0.0
    %148 = vmatpush.msra.mxu0 0.0
    %149 = vmatpush.msra.mxu0 0.0
    %150 = vmatpush.msra.mxu0 0.0
    %151 = vmatpush.msra.mxu0 0.0
    %152 = vmatpush.msra.mxu0 %v131
    %153 = vmatpush.msra.mxu0 %v129
    %154 = vmatpush.msra.mxu0 %v127
    %155 = vmatpush.msra.mxu0 %v125
    %156 = vmatpush.msra.mxu0 %v123
    %157 = vmatpush.msra.mxu0 %v121
    %158 = vmatpush.msra.mxu0 %v119
    %159 = vmatpush.msra.mxu0 %v117
    %160 = vmatmul.f32.gmra.mxu0 %v142
    %v161 = vpop.f32.mrf.mxu0
    %v162 = vadd.f32 %v136, %v161
    %163 = vdwg.mxu0
    %164 = vmatpush.msra.mxu0 0.0
    %165 = vmatpush.msra.mxu0 0.0
    %166 = vmatpush.msra.mxu0 0.0
    %167 = vmatpush.msra.mxu0 0.0
    %168 = vmatpush.msra.mxu0 0.0
    %169 = vmatpush.msra.mxu0 0.0
    %170 = vmatpush.msra.mxu0 0.0
    %171 = vmatpush.msra.mxu0 0.0
    %172 = vmatpush.msra.mxu0 %v132
    %173 = vmatpush.msra.mxu0 %v130
    %174 = vmatpush.msra.mxu0 %v128
    %175 = vmatpush.msra.mxu0 %v126
    %176 = vmatpush.msra.mxu0 %v124
    %177 = vmatpush.msra.mxu0 %v122
    %178 = vmatpush.msra.mxu0 %v120
    %179 = vmatpush.msra.mxu0 %v118
    %180 = vmatmul.f32.gmra.mxu0 %v142
    %v181 = vpop.f32.mrf.mxu0
    %v182 = vadd.f32 %v137, %v181
    %183 = vdwg.mxu0
    %v184 = vtanh.pop %v162
    %v185 = vtanh.pop %v182
    %186 = vst [vmem:[#allocation8] sm:$0xff] %v184
    %187 = vst [vmem:[#allocation8 + $0x8] sm:$0xff] %v185
    // Predicated region
    $region26: #{tpu_custom_call.1} parent=1 // pred_check
      _
    $region27: #{tpu_custom_call.1} parent=1 // pred_check_branch
      %189 = sbr.rel (0) target = $region29
    $region28: #{tpu_custom_call.1} parent=1 // pred_region
      %191 = vsyncadd [#allocation4], 0
      %s193 = sshll.u32 [#allocation8], 4
      %s194 = int_to_ptr.vmem [resolvable:$true] %s193
      %s195 = sshll.u32 %s3, 4
      %s196 = int_to_ptr.hbm [resolvable:$true] %s195
      %198 = dma.vmem_to_hbm [thread:$0]  %s194, 256, %s196, [#allocation4]
    $region29: #{tpu_custom_call.1} parent=1 // pred_fallthru
      _
    // Predicated region
    $region30: #{tpu_custom_call.1} parent=1 // pred_check
      _
    $region31: #{tpu_custom_call.1} parent=1 // pred_check_branch
      %200 = sbr.rel (0) target = $region33
    $region32: #{tpu_custom_call.1} parent=1 // pred_region
      %202 = dma.done [#allocation4], 256
    $region33: #{tpu_custom_call.1} parent=1 // pred_fallthru
      _
    %203 = vsyncpa [#allocation3], 1
    %204 = vsyncpa [#allocation6], 1
    %205 = vsyncpa [#allocation4], 1

</llo_original>
